<compile_context>
chip_gen: v7x
topology: tpu7x:2x2x1
jax: 0.10.0
libtpu: 0.0.40
codegen_flags: <defaults>
</compile_context>

<pallas_src>
import jax
import jax.numpy as jnp
from jax.experimental import pallas as pl
from jax.experimental.pallas import tpu as pltpu


NEG_SLOPE = 0.01  # PyTorch nn.LeakyReLU default


def fuse_kernel(x_ref, w1_ref, b1_ref, w2_ref, w2sq_ref, bf_ref, o_ref):
    # x_ref: (1, C, T, tn) tile in native layout: T on sublanes, HW on lanes.
    x = x_ref[0].astype(jnp.float32)          # (C, T, tn)

    mx = jnp.max(x, axis=1)                   # (C, tn)  max over T
    sx = jnp.sum(x, axis=1)                   # (C, tn)  sum over T (1/T folded into w2sq)

    # conv1 (1x1) + LeakyReLU on the max branch:  W1 @ mx + b1
    x1 = jnp.dot(w1_ref[...], mx, preferred_element_type=jnp.float32) + b1_ref[...]
    x1 = jnp.where(x1 >= 0, x1, NEG_SLOPE * x1)

    # y = conv2(x1 + conv2(mean)) folded:
    #   w2 @ x1 + (w2 @ w2 / T) @ sum_T(x) + (w2 @ b2 + b2)
    y = (jnp.dot(w2_ref[...], x1, preferred_element_type=jnp.float32)
         + jnp.dot(w2sq_ref[...], sx, preferred_element_type=jnp.float32)
         + bf_ref[...])

    o_ref[0] = y.astype(o_ref.dtype)


def fuse_forward(x, w1, b1, w2, b2, *, tile_n=512):
    """x: [B, C, T, H, W]; w*: [C_out, C_in] (Conv2d weight[..., 0, 0]); b*: [C]."""
    B, C, T, H, W = x.shape
    HW = H * W

    # Native layout, zero-copy reshape (no transpose, no extra HBM pass).
    x_r = x.reshape(B, C, T, HW)

    # Lane tile over H*W.  Full extent needs no divisibility / padding;
    # otherwise use a 128-multiple chunk and zero-pad (sliced off below).
    if HW <= max(tile_n, 128):
        tn = HW
        hw_pad = HW
    else:
        tn = max(128, (min(tile_n, HW) // 128) * 128)
        hw_pad = -(-HW // tn) * tn
        if hw_pad != HW:
            x_r = jnp.pad(x_r, ((0, 0), (0, 0), (0, 0), (0, hw_pad - HW)))

    # Host-side constant prep (1x1 convs as (C,C) @ (C,tn) matmuls).
    w1f = w1.astype(jnp.float32)
    w2f = w2.astype(jnp.float32)
    b1c = b1.reshape(C, 1).astype(jnp.float32)
    b2c = b2.reshape(C, 1).astype(jnp.float32)
    w2sq_over_T = (w2f @ w2f) / jnp.float32(T)     # folds mean's 1/T
    b_fused = w2f @ b2c + b2c                      # conv2-of-conv2 bias term

    grid = (B, hw_pad // tn)

    out = pl.pallas_call(
        fuse_kernel,
        out_shape=jax.ShapeDtypeStruct((B, C, hw_pad), x.dtype),
        grid_spec=pltpu.PrefetchScalarGridSpec(
            num_scalar_prefetch=0,
            grid=grid,
            in_specs=[
                pl.BlockSpec((1, C, T, tn), lambda b, j: (b, 0, 0, j)),
                pl.BlockSpec((C, C), lambda b, j: (0, 0)),
                pl.BlockSpec((C, 1), lambda b, j: (0, 0)),
                pl.BlockSpec((C, C), lambda b, j: (0, 0)),
                pl.BlockSpec((C, C), lambda b, j: (0, 0)),
                pl.BlockSpec((C, 1), lambda b, j: (0, 0)),
            ],
            out_specs=pl.BlockSpec((1, C, tn), lambda b, j: (b, 0, j)),
        ),
        compiler_params=pltpu.CompilerParams(
            dimension_semantics=("parallel", "parallel")),
    )(x_r, w1f, b1c, w2f, w2sq_over_T, b_fused)

    # (B, C, HW_pad) -> NCHW (B, C, H, W); zero-copy when no padding.
    return out[:, :, :HW].reshape(B, C, H, W)


def fuse_reference(x, w1, b1, w2, b2):
    """Pure-JAX reference of the PyTorch forward for a correctness check."""
    mx = jnp.max(x, axis=2)                                   # [B, C, H, W]
    av = jnp.mean(x, axis=2)

    def conv1x1(v, w, b):
        return jnp.einsum("bchw,oc->bohw", v, w) + b[None, :, None, None]

    x1 = conv1x1(mx, w1, b1)
    x1 = jnp.where(x1 >= 0, x1, NEG_SLOPE * x1)
    x2 = conv1x1(av, w2, b2)
    y = x1 + x2
    return conv1x1(y, w2, b2)


def init_params(key, channels):
    # Deterministic init mimicking PyTorch Conv2d default:
    # bound = 1/sqrt(fan_in), fan_in = channels * 1 * 1.
    k1, k2, k3, k4 = jax.random.split(key, 4)
    bound = 1.0 / jnp.sqrt(jnp.float32(channels))
    w1 = jax.random.uniform(k1, (channels, channels), jnp.float32, -bound, bound)
    b1 = jax.random.uniform(k2, (channels,), jnp.float32, -bound, bound)
    w2 = jax.random.uniform(k3, (channels, channels), jnp.float32, -bound, bound)
    b2 = jax.random.uniform(k4, (channels,), jnp.float32, -bound, bound)
    return w1, b1, w2, b2


if __name__ == "__main__":
    key = jax.random.PRNGKey(0)
    kx, kp = jax.random.split(key)

    B, C, T, H, W = 2, 8, 4, 16, 16          # small shapes; x is NCTHW (dim=2 == T)
    x = jax.random.normal(kx, (B, C, T, H, W), jnp.float32)
    w1, b1, w2, b2 = init_params(kp, C)

    out = fuse_forward(x, w1, b1, w2, b2)
    out = jax.block_until_ready(out)

    ref = fuse_reference(x, w1, b1, w2, b2)
    assert out.shape == (B, C, H, W)
    assert jnp.allclose(out, ref, atol=1e-4, rtol=1e-4), "mismatch vs reference"

    print("KERNEL_OK")
</pallas_src>

<mosaic_0001>
module attributes {stable_mosaic.version = 11 : i64} {
  func.func @fuse_kernel(%arg0: i32, %arg1: i32, %arg2: memref<1x8x4x256xf32, #tpu.memory_space<vmem>>, %arg3: memref<8x8xf32, #tpu.memory_space<vmem>>, %arg4: memref<8x1xf32, #tpu.memory_space<vmem>>, %arg5: memref<8x8xf32, #tpu.memory_space<vmem>>, %arg6: memref<8x8xf32, #tpu.memory_space<vmem>>, %arg7: memref<8x1xf32, #tpu.memory_space<vmem>>, %arg8: memref<1x8x256xf32, #tpu.memory_space<vmem>>) attributes {dimension_semantics = [#tpu.dimension_semantics<parallel>, #tpu.dimension_semantics<parallel>], iteration_bounds = array<i64: 2, 1>, scalar_prefetch = 0 : i64, scratch_operands = 0 : i64, tpu.core_type = #tpu.core_type<tc>, window_params = [{transform_indices = @transform_0, window_bounds = array<i64: 1, 8, 4, 256>}, {pipeline_mode = #tpu.pipeline_mode<synchronous>, transform_indices = @transform_1, window_bounds = array<i64: 8, 8>}, {pipeline_mode = #tpu.pipeline_mode<synchronous>, transform_indices = @transform_2, window_bounds = array<i64: 8, 1>}, {pipeline_mode = #tpu.pipeline_mode<synchronous>, transform_indices = @transform_3, window_bounds = array<i64: 8, 8>}, {pipeline_mode = #tpu.pipeline_mode<synchronous>, transform_indices = @transform_4, window_bounds = array<i64: 8, 8>}, {pipeline_mode = #tpu.pipeline_mode<synchronous>, transform_indices = @transform_5, window_bounds = array<i64: 8, 1>}, {transform_indices = @transform_6, window_bounds = array<i64: 1, 8, 256>}]} {
    %c0 = arith.constant 0 : index
    %c0_0 = arith.constant 0 : index
    %c0_1 = arith.constant 0 : index
    %c0_2 = arith.constant 0 : index
    %0 = vector.load %arg2[%c0, %c0_0, %c0_1, %c0_2] : memref<1x8x4x256xf32, #tpu.memory_space<vmem>>, vector<1x8x4x256xf32>
    %1 = vector.shape_cast %0 : vector<1x8x4x256xf32> to vector<8x4x256xf32>
    %cst = arith.constant dense<0xFF800000> : vector<8x256xf32>
    %2 = vector.multi_reduction <maximumf>, %1, %cst [1] : vector<8x4x256xf32> to vector<8x256xf32>
    %cst_3 = arith.constant dense<0.000000e+00> : vector<8x256xf32>
    %3 = vector.multi_reduction <add>, %1, %cst_3 [1] : vector<8x4x256xf32> to vector<8x256xf32>
    %c0_4 = arith.constant 0 : index
    %c0_5 = arith.constant 0 : index
    %4 = vector.load %arg3[%c0_4, %c0_5] : memref<8x8xf32, #tpu.memory_space<vmem>>, vector<8x8xf32>
    %cst_6 = arith.constant dense<0.000000e+00> : vector<8x256xf32>
    %5 = tpu.matmul %4, %2, %cst_6 {dimension_numbers = #tpu.dot_dimension_numbers<[1], [0], [0], [1], [0, 0, 1, 1], [], []>} : vector<8x8xf32>, vector<8x256xf32>, vector<8x256xf32> -> vector<8x256xf32>
    %c0_7 = arith.constant 0 : index
    %c0_8 = arith.constant 0 : index
    %6 = vector.load %arg4[%c0_7, %c0_8] : memref<8x1xf32, #tpu.memory_space<vmem>>, vector<8x1xf32>
    %7 = vector.broadcast %6 : vector<8x1xf32> to vector<8x256xf32>
    %8 = arith.addf %5, %7 : vector<8x256xf32>
    %cst_9 = arith.constant 0.000000e+00 : f32
    %9 = vector.broadcast %cst_9 : f32 to vector<8x256xf32>
    %10 = arith.cmpf oge, %8, %9 : vector<8x256xf32>
    %cst_10 = arith.constant 0.00999999977 : f32
    %11 = vector.broadcast %cst_10 : f32 to vector<8x256xf32>
    %12 = arith.mulf %11, %8 : vector<8x256xf32>
    %13 = arith.select %10, %8, %12 : vector<8x256xi1>, vector<8x256xf32>
    %c0_11 = arith.constant 0 : index
    %c0_12 = arith.constant 0 : index
    %14 = vector.load %arg5[%c0_11, %c0_12] : memref<8x8xf32, #tpu.memory_space<vmem>>, vector<8x8xf32>
    %cst_13 = arith.constant dense<0.000000e+00> : vector<8x256xf32>
    %15 = tpu.matmul %14, %13, %cst_13 {dimension_numbers = #tpu.dot_dimension_numbers<[1], [0], [0], [1], [0, 0, 1, 1], [], []>} : vector<8x8xf32>, vector<8x256xf32>, vector<8x256xf32> -> vector<8x256xf32>
    %c0_14 = arith.constant 0 : index
    %c0_15 = arith.constant 0 : index
    %16 = vector.load %arg6[%c0_14, %c0_15] : memref<8x8xf32, #tpu.memory_space<vmem>>, vector<8x8xf32>
    %cst_16 = arith.constant dense<0.000000e+00> : vector<8x256xf32>
    %17 = tpu.matmul %16, %3, %cst_16 {dimension_numbers = #tpu.dot_dimension_numbers<[1], [0], [0], [1], [0, 0, 1, 1], [], []>} : vector<8x8xf32>, vector<8x256xf32>, vector<8x256xf32> -> vector<8x256xf32>
    %18 = arith.addf %15, %17 : vector<8x256xf32>
    %c0_17 = arith.constant 0 : index
    %c0_18 = arith.constant 0 : index
    %19 = vector.load %arg7[%c0_17, %c0_18] : memref<8x1xf32, #tpu.memory_space<vmem>>, vector<8x1xf32>
    %20 = vector.broadcast %19 : vector<8x1xf32> to vector<8x256xf32>
    %21 = arith.addf %18, %20 : vector<8x256xf32>
    %c0_19 = arith.constant 0 : index
    %c0_20 = arith.constant 0 : index
    %c0_21 = arith.constant 0 : index
    %22 = vector.load %arg8[%c0_19, %c0_20, %c0_21] : memref<1x8x256xf32, #tpu.memory_space<vmem>>, vector<1x8x256xf32>
    %23 = vector.shape_cast %22 : vector<1x8x256xf32> to vector<8x256xf32>
    %24 = vector.shape_cast %21 : vector<8x256xf32> to vector<1x8x256xf32>
    tpu.vector_store %arg8[%c0_19, %c0_20, %c0_21], %24 {strides = array<i32>} : memref<1x8x256xf32, #tpu.memory_space<vmem>>, vector<1x8x256xf32>,
    return
  }
  func.func @transform_0(%arg0: i32, %arg1: i32) -> (i32, i32, i32, i32) {
    %c0_i32 = arith.constant 0 : i32
    %c0_i32_0 = arith.constant 0 : i32
    %c0_i32_1 = arith.constant 0 : i32
    return %arg0, %c0_i32, %c0_i32_0, %arg1 : i32, i32, i32, i32
  }
  func.func @transform_1(%arg0: i32, %arg1: i32) -> (i32, i32) {
    %c0_i32 = arith.constant 0 : i32
    %c0_i32_0 = arith.constant 0 : i32
    %c0_i32_1 = arith.constant 0 : i32
    return %c0_i32, %c0_i32_0 : i32, i32
  }
  func.func @transform_2(%arg0: i32, %arg1: i32) -> (i32, i32) {
    %c0_i32 = arith.constant 0 : i32
    %c0_i32_0 = arith.constant 0 : i32
    %c0_i32_1 = arith.constant 0 : i32
    return %c0_i32, %c0_i32_0 : i32, i32
  }
  func.func @transform_3(%arg0: i32, %arg1: i32) -> (i32, i32) {
    %c0_i32 = arith.constant 0 : i32
    %c0_i32_0 = arith.constant 0 : i32
    %c0_i32_1 = arith.constant 0 : i32
    return %c0_i32, %c0_i32_0 : i32, i32
  }
  func.func @transform_4(%arg0: i32, %arg1: i32) -> (i32, i32) {
    %c0_i32 = arith.constant 0 : i32
    %c0_i32_0 = arith.constant 0 : i32
    %c0_i32_1 = arith.constant 0 : i32
    return %c0_i32, %c0_i32_0 : i32, i32
  }
  func.func @transform_5(%arg0: i32, %arg1: i32) -> (i32, i32) {
    %c0_i32 = arith.constant 0 : i32
    %c0_i32_0 = arith.constant 0 : i32
    %c0_i32_1 = arith.constant 0 : i32
    return %c0_i32, %c0_i32_0 : i32, i32
  }
  func.func @transform_6(%arg0: i32, %arg1: i32) -> (i32, i32, i32) {
    %c0_i32 = arith.constant 0 : i32
    %c0_i32_0 = arith.constant 0 : i32
    return %arg0, %c0_i32, %arg1 : i32, i32, i32
  }
}

</mosaic_0001>

<llo_original>
// kernel: tpu_custom_call.1
$region0: #{tpu_custom_call.1}
  #allocation0 [shape = 'u32[]', space=smem, size = 0x4, offset = 0x4, fixed_abs, tag = 'smem constant byte address 0x4 - core index']
  #allocation1 [shape = 'u32[144,128]{1,0:T(1,128)}', space=vmem, size = 0x12000, scoped, tag = 'internal scratch']
  %s0 = inlined_call_operand.hbm [shape: f32[2,8,4,256], index: 0, kind: input, shape index: {}]
  %s1 = inlined_call_operand.vmem [shape: f32[8,8], index: 1, kind: input, shape index: {}]
  %s2 = inlined_call_operand.vmem [shape: f32[8,1], index: 2, kind: input, shape index: {}]
  %s3 = inlined_call_operand.vmem [shape: f32[8,8], index: 3, kind: input, shape index: {}]
  %s4 = inlined_call_operand.vmem [shape: f32[8,8], index: 4, kind: input, shape index: {}]
  %s5 = inlined_call_operand.vmem [shape: f32[8,1], index: 5, kind: input, shape index: {}]
  %s6 = inlined_call_operand.hbm [shape: f32[2,8,256], index: 6, kind: output, shape index: {}]
  %s7 = sld [smem:[#allocation0]]
  $region61: #{tpu_custom_call.1} parent=0
    _
  %s9 = ssub.s32 1, %s7
  %s10 = scalar_select 0, %s9, %s7
  $region1: #{tpu_custom_call.1} parent=0
    #allocation2 [shape = 'u8[65536]{0}', space=vmem, size = 0x10000, scoped, tag = 'input window, operand 0']
    #allocation3 [shape = 's32[2]{0}', space=sflag, size = 0x8, scoped, tag = 'scoped memory for tpu_custom_call.1']
    #allocation4 [shape = 's32[2]{0}', space=sflag, size = 0x8, scoped, tag = 'scoped memory for tpu_custom_call.1']
    #allocation5 [shape = 'u8[16384]{0}', space=vmem, size = 0x4000, scoped, tag = 'output window, operand 0']
    %11 = vsyncpa [#allocation3], 0
    %s12 = scalar_lea.sflag [#allocation3], 1
    %13 = vsyncpa %s12, 0
    %14 = vsyncpa [#allocation4], 0
    %s15 = scalar_lea.sflag [#allocation4], 1
    %16 = vsyncpa %s15, 0
    loop: start=0, step=1, limit=4
    $region2: #{tpu_custom_call.1} parent=1 // loop_pre_header
      _
    $region3: #{tpu_custom_call.1} parent=1 // loop_header
      %s18 = sphi 0, %s22
      %p19 = scmp.ge.s32.totalorder %s18, 4
      %s25 = sphi 0, %s37
      %s26 = sphi 0, %s33
      %s27 = sphi 0, %s25
      %s28 = sphi 0, %s26
      %s29 = sphi 0, %s27
      %s30 = sphi 0, %s28
      %s42 = sphi 0, %s44
      %s45 = sphi 0, %s42
      %s46 = sphi 0, %s45
      %s62 = sphi 0, %s46
      %s66 = sphi 0, %s66
      %s68 = sphi 0, %s66
      %s69 = sphi 0, %s68
      %s83 = sphi 0, %s69
      %s87 = sphi 0, %s87
      %s89 = sphi 0, %s87
      %s90 = sphi 0, %s89
      %s104 = sphi 0, %s90
      %s108 = sphi 0, %s108
      %s110 = sphi 0, %s108
      %s111 = sphi 0, %s110
      %s125 = sphi 0, %s111
      %s129 = sphi 0, %s129
      %s131 = sphi 0, %s129
      %s132 = sphi 0, %s131
      %s146 = sphi 0, %s132
      %s150 = sphi 0, %s150
      %s152 = sphi 0, %s150
      %s153 = sphi 0, %s152
      %s167 = sphi 0, %s153
      %s175 = sphi 0, %s177
      %s178 = sphi 0, %s175
      %s179 = sphi 0, %s178
      %s195 = sphi 0, %s179
    $region4: #{tpu_custom_call.1} parent=1 // loop_header_branch
      %21 = sbr.rel (%p19) target = $region8
    $region5: #{tpu_custom_call.1} parent=1 // loop_body
      %s23 = ssub.s32 %s18, 1
      %s24 = ssub.s32 %s18, 2
      %s31 = sadd.s32 1, %s26
      %p32 = scmp.ge.s32.totalorder %s31, 1
      %s33 = scalar_select %p32, 0, %s31
      %s34 = sadd.s32 1, %s25
      %s35 = scalar_select %p32, %s34, %s25
      %p36 = scmp.ge.s32.totalorder %s35, 2
      %s37 = scalar_select %p36, 0, %s35
      %s38 = ssub.s32 %s25, %s37
      %s39 = ssub.s32 %s26, %s33
      %s40 = sor.u32 %s38, %s39
      %p41 = scmp.eq.s32.totalorder %s40, 0
      %s43 = sadd.s32 %s42, 1
      %s44 = scalar_select %p41, %s42, %s43
      %p47 = pneg %p41
      %p48 = scmp.eq.s32.totalorder %s18, 1
      %p49 = por %p47, %p48
      %p50 = scmp.ne.s32.totalorder %s42, %s45
      %p51 = scmp.eq.s32.totalorder %s18, 0
      %p52 = por %p50, %p51
      %p53 = scmp.ne.s32.totalorder %s42, %s45
      %p54 = scmp.eq.s32.totalorder %s23, 1
      %p55 = por %p53, %p54
      %p56 = scmp.ne.s32.totalorder %s45, %s46
      %p57 = scmp.eq.s32.totalorder %s23, 0
      %p58 = por %p56, %p57
      %p59 = scmp.ne.s32.totalorder %s45, %s46
      %p60 = scmp.eq.s32.totalorder %s24, 1
      %p61 = por %p59, %p60
      %p63 = scmp.ne.s32.totalorder %s46, %s62
      %p64 = scmp.eq.s32.totalorder %s24, 0
      %p65 = por %p63, %p64
      %s67 = sadd.s32 %s66, 1
      %p70 = scmp.eq.s32.totalorder %s18, 1
      %p71 = scmp.ne.s32.totalorder %s66, %s68
      %p72 = scmp.eq.s32.totalorder %s18, 0
      %p73 = por %p71, %p72
      %p74 = scmp.ne.s32.totalorder %s66, %s68
      %p75 = scmp.eq.s32.totalorder %s23, 1
      %p76 = por %p74, %p75
      %p77 = scmp.ne.s32.totalorder %s68, %s69
      %p78 = scmp.eq.s32.totalorder %s23, 0
      %p79 = por %p77, %p78
      %p80 = scmp.ne.s32.totalorder %s68, %s69
      %p81 = scmp.eq.s32.totalorder %s24, 1
      %p82 = por %p80, %p81
      %p84 = scmp.ne.s32.totalorder %s69, %s83
      %p85 = scmp.eq.s32.totalorder %s24, 0
      %p86 = por %p84, %p85
      %s88 = sadd.s32 %s87, 1
      %p91 = scmp.eq.s32.totalorder %s18, 1
      %p92 = scmp.ne.s32.totalorder %s87, %s89
      %p93 = scmp.eq.s32.totalorder %s18, 0
      %p94 = por %p92, %p93
      %p95 = scmp.ne.s32.totalorder %s87, %s89
      %p96 = scmp.eq.s32.totalorder %s23, 1
      %p97 = por %p95, %p96
      %p98 = scmp.ne.s32.totalorder %s89, %s90
      %p99 = scmp.eq.s32.totalorder %s23, 0
      %p100 = por %p98, %p99
      %p101 = scmp.ne.s32.totalorder %s89, %s90
      %p102 = scmp.eq.s32.totalorder %s24, 1
      %p103 = por %p101, %p102
      %p105 = scmp.ne.s32.totalorder %s90, %s104
      %p106 = scmp.eq.s32.totalorder %s24, 0
      %p107 = por %p105, %p106
      %s109 = sadd.s32 %s108, 1
      %p112 = scmp.eq.s32.totalorder %s18, 1
      %p113 = scmp.ne.s32.totalorder %s108, %s110
      %p114 = scmp.eq.s32.totalorder %s18, 0
      %p115 = por %p113, %p114
      %p116 = scmp.ne.s32.totalorder %s108, %s110
      %p117 = scmp.eq.s32.totalorder %s23, 1
      %p118 = por %p116, %p117
      %p119 = scmp.ne.s32.totalorder %s110, %s111
      %p120 = scmp.eq.s32.totalorder %s23, 0
      %p121 = por %p119, %p120
      %p122 = scmp.ne.s32.totalorder %s110, %s111
      %p123 = scmp.eq.s32.totalorder %s24, 1
      %p124 = por %p122, %p123
      %p126 = scmp.ne.s32.totalorder %s111, %s125
      %p127 = scmp.eq.s32.totalorder %s24, 0
      %p128 = por %p126, %p127
      %s130 = sadd.s32 %s129, 1
      %p133 = scmp.eq.s32.totalorder %s18, 1
      %p134 = scmp.ne.s32.totalorder %s129, %s131
      %p135 = scmp.eq.s32.totalorder %s18, 0
      %p136 = por %p134, %p135
      %p137 = scmp.ne.s32.totalorder %s129, %s131
      %p138 = scmp.eq.s32.totalorder %s23, 1
      %p139 = por %p137, %p138
      %p140 = scmp.ne.s32.totalorder %s131, %s132
      %p141 = scmp.eq.s32.totalorder %s23, 0
      %p142 = por %p140, %p141
      %p143 = scmp.ne.s32.totalorder %s131, %s132
      %p144 = scmp.eq.s32.totalorder %s24, 1
      %p145 = por %p143, %p144
      %p147 = scmp.ne.s32.totalorder %s132, %s146
      %p148 = scmp.eq.s32.totalorder %s24, 0
      %p149 = por %p147, %p148
      %s151 = sadd.s32 %s150, 1
      %p154 = scmp.eq.s32.totalorder %s18, 1
      %p155 = scmp.ne.s32.totalorder %s150, %s152
      %p156 = scmp.eq.s32.totalorder %s18, 0
      %p157 = por %p155, %p156
      %p158 = scmp.ne.s32.totalorder %s150, %s152
      %p159 = scmp.eq.s32.totalorder %s23, 1
      %p160 = por %p158, %p159
      %p161 = scmp.ne.s32.totalorder %s152, %s153
      %p162 = scmp.eq.s32.totalorder %s23, 0
      %p163 = por %p161, %p162
      %p164 = scmp.ne.s32.totalorder %s152, %s153
      %p165 = scmp.eq.s32.totalorder %s24, 1
      %p166 = por %p164, %p165
      %p168 = scmp.ne.s32.totalorder %s153, %s167
      %p169 = scmp.eq.s32.totalorder %s24, 0
      %p170 = por %p168, %p169
      %s171 = ssub.s32 %s25, %s37
      %s172 = ssub.s32 %s26, %s33
      %s173 = sor.u32 %s171, %s172
      %p174 = scmp.eq.s32.totalorder %s173, 0
      %s176 = sadd.s32 %s175, 1
      %s177 = scalar_select %p174, %s175, %s176
      %p180 = pneg %p174
      %p181 = scmp.eq.s32.totalorder %s18, 1
      %p182 = por %p180, %p181
      %p183 = scmp.ne.s32.totalorder %s175, %s178
      %p184 = scmp.eq.s32.totalorder %s18, 0
      %p185 = por %p183, %p184
      %p186 = scmp.ne.s32.totalorder %s175, %s178
      %p187 = scmp.eq.s32.totalorder %s23, 1
      %p188 = por %p186, %p187
      %p189 = scmp.ne.s32.totalorder %s178, %s179
      %p190 = scmp.eq.s32.totalorder %s23, 0
      %p191 = por %p189, %p190
      %p192 = scmp.ne.s32.totalorder %s178, %s179
      %p193 = scmp.eq.s32.totalorder %s24, 1
      %p194 = por %p192, %p193
      %p196 = scmp.ne.s32.totalorder %s179, %s195
      %p197 = scmp.eq.s32.totalorder %s24, 0
      %p198 = por %p196, %p197
      %p199 = scmp.le.s32.totalorder 1, %s18
      %p200 = scmp.lt.s32.totalorder %s18, 3
      %p201 = pnand %p199, %p200
      %p202 = pneg %p201
      // Predicated region
      $region9: #{tpu_custom_call.1} parent=5 // pred_check
        _
      $region10: #{tpu_custom_call.1} parent=5 // pred_check_branch
        %204 = sbr.rel (%p201) target = $region12
      $region11: #{tpu_custom_call.1} parent=5 // pred_region
        %s205 = ssub.s32 %s18, 1
        // Predicated region
        $region13: #{tpu_custom_call.1} parent=11 // pred_check
          %p206 = pneg %p79
        $region14: #{tpu_custom_call.1} parent=11 // pred_check_branch
          %208 = sbr.rel (%p206) target = $region16
        $region15: #{tpu_custom_call.1} parent=11 // pred_region
          _
        $region16: #{tpu_custom_call.1} parent=11 // pred_fallthru
          _
        // Predicated region
        $region17: #{tpu_custom_call.1} parent=11 // pred_check
          %p209 = pneg %p100
        $region18: #{tpu_custom_call.1} parent=11 // pred_check_branch
          %211 = sbr.rel (%p209) target = $region20
        $region19: #{tpu_custom_call.1} parent=11 // pred_region
          _
        $region20: #{tpu_custom_call.1} parent=11 // pred_fallthru
          _
        // Predicated region
        $region21: #{tpu_custom_call.1} parent=11 // pred_check
          %p212 = pneg %p121
        $region22: #{tpu_custom_call.1} parent=11 // pred_check_branch
          %214 = sbr.rel (%p212) target = $region24
        $region23: #{tpu_custom_call.1} parent=11 // pred_region
          _
        $region24: #{tpu_custom_call.1} parent=11 // pred_fallthru
          _
        // Predicated region
        $region25: #{tpu_custom_call.1} parent=11 // pred_check
          %p215 = pneg %p142
        $region26: #{tpu_custom_call.1} parent=11 // pred_check_branch
          %217 = sbr.rel (%p215) target = $region28
        $region27: #{tpu_custom_call.1} parent=11 // pred_region
          _
        $region28: #{tpu_custom_call.1} parent=11 // pred_fallthru
          _
        // Predicated region
        $region29: #{tpu_custom_call.1} parent=11 // pred_check
          %p218 = pneg %p163
        $region30: #{tpu_custom_call.1} parent=11 // pred_check_branch
          %220 = sbr.rel (%p218) target = $region32
        $region31: #{tpu_custom_call.1} parent=11 // pred_region
          _
        $region32: #{tpu_custom_call.1} parent=11 // pred_fallthru
          _
      $region12: #{tpu_custom_call.1} parent=5 // pred_fallthru
        _
      %p221 = scmp.lt.s32.totalorder %s18, 2
      // Predicated region
      $region33: #{tpu_custom_call.1} parent=5 // pred_check
        %p222 = pneg %p221
      $region34: #{tpu_custom_call.1} parent=5 // pred_check_branch
        %224 = sbr.rel (%p222) target = $region36
      $region35: #{tpu_custom_call.1} parent=5 // pred_region
        // Predicated region
        $region37: #{tpu_custom_call.1} parent=35 // pred_check
          %p225 = pneg %p52
        $region38: #{tpu_custom_call.1} parent=35 // pred_check_branch
          %227 = sbr.rel (%p225) target = $region40
        $region39: #{tpu_custom_call.1} parent=35 // pred_region
          %s228 = sand.u32 %s42, 1
          %s229 = scalar_lea.sflag [#allocation3], %s228
          %s230 = sand.u32 %s42, 1
          %s231 = smul.addr %s230, 64
          %s232 = scalar_lea.vmem [#allocation2], %s231
          %s233 = smul.u32 2, %s26
          %s235 = ssub.s32 1024, 1024
          %236 = vsyncadd %s229, %s235
          %s237 = smul.addr %s25, 16
          %s238 = sadd.s32 %s233, %s237
          %s239 = smul.addr %s238, 64
          %s240 = scalar_lea.hbm %s0, %s239
          %s241 = sshll.u32 %s232, 4
          %s242 = int_to_ptr.vmem [resolvable:$true] %s241
          %247 = dma.hbm_to_vmem [thread:$0]  %s240, 1024, %s242, %s229, 128, 128, 8
        $region40: #{tpu_custom_call.1} parent=35 // pred_fallthru
          _
      $region36: #{tpu_custom_call.1} parent=5 // pred_fallthru
        _
      %p248 = scmp.le.s32.totalorder 1, %s18
      %p249 = scmp.lt.s32.totalorder %s18, 3
      %p250 = pnand %p248, %p249
      %p251 = pneg %p250
      // Predicated region
      $region41: #{tpu_custom_call.1} parent=5 // pred_check
        _
      $region42: #{tpu_custom_call.1} parent=5 // pred_check_branch
        %253 = sbr.rel (%p250) target = $region44
      $region43: #{tpu_custom_call.1} parent=5 // pred_region
        %s254 = ssub.s32 %s18, 1
        %s255 = sand.u32 %s45, 1
        %s256 = scalar_lea.sflag [#allocation3], %s255
        %s257 = sand.u32 %s45, 1
        %s258 = smul.addr %s257, 64
        %s259 = scalar_lea.vmem [#allocation2], %s258
        // Predicated region
        $region45: #{tpu_custom_call.1} parent=43 // pred_check
          %p260 = pneg %p58
        $region46: #{tpu_custom_call.1} parent=43 // pred_check_branch
          %262 = sbr.rel (%p260) target = $region48
        $region47: #{tpu_custom_call.1} parent=43 // pred_region
          %263 = dma.done %s256, 1024
        $region48: #{tpu_custom_call.1} parent=43 // pred_fallthru
          _
        %s264 = sand.u32 %s45, 1
        %s265 = scalar_lea.sflag [#allocation3], %s264
        %s266 = sand.u32 %s45, 1
        %s267 = smul.addr %s266, 64
        %s268 = scalar_lea.vmem [#allocation2], %s267
        %p269 = pneg %p58
        %p270 = pneg %p55
        %p271 = pneg %p79
        %p272 = pneg %p76
        %p273 = pneg %p100
        %p274 = pneg %p97
        %p275 = pneg %p121
        %p276 = pneg %p118
        %p277 = pneg %p142
        %p278 = pneg %p139
        %p279 = pneg %p163
        %p280 = pneg %p160
        %p281 = pneg %p191
        %p282 = pneg %p188
        %s283 = sand.u32 %s178, 1
        %s284 = scalar_lea.sflag [#allocation4], %s283
        %s285 = sand.u32 %s178, 1
        %s286 = smul.addr %s285, 16
        %s287 = scalar_lea.vmem [#allocation5], %s286
        %s288 = smul.u32 2, %s28
        %s289 = smul.u32 2, %s28
        %v290 = vld [vmem:[%s259] sm:$0xff]
        %v291 = vld [vmem:[%s259 + $0x8] sm:$0xff]
        %v292 = vld [vmem:[%s259 + $0x10] sm:$0xff]
        %v293 = vld [vmem:[%s259 + $0x18] sm:$0xff]
        %v294 = vld [vmem:[%s259 + $0x20] sm:$0xff]
        %v295 = vld [vmem:[%s259 + $0x28] sm:$0xff]
        %v296 = vld [vmem:[%s259 + $0x30] sm:$0xff]
        %v297 = vld [vmem:[%s259 + $0x38] sm:$0xff]
        %v306 = vcombine.high %v290, %v290
        %v307 = vcombine.high %v291, %v291
        %v308 = vcombine.high %v292, %v292
        %v309 = vcombine.high %v293, %v293
        %v310 = vcombine.high %v294, %v294
        %v311 = vcombine.high %v295, %v295
        %v312 = vcombine.high %v296, %v296
        %v313 = vcombine.high %v297, %v297
        %vm322 = vcmask 1043456
        %v323 = vsel %vm322, %v290, -inf
        %v324 = vrot.slane %v323, 4
        %v325 = vmax.f32 %v323, %v324
        %v326 = vrot.slane %v325, 2
        %v327 = vmax.f32 %v325, %v326
        %v328 = vrot.slane %v327, 1
        %v329 = vmax.f32 %v327, %v328
        %v330 = vsel %vm322, %v306, -inf
        %v331 = vrot.slane %v330, 4
        %v332 = vmax.f32 %v330, %v331
        %v333 = vrot.slane %v332, 2
        %v334 = vmax.f32 %v332, %v333
        %v335 = vrot.slane %v334, 1
        %v336 = vmax.f32 %v334, %v335
        %v337 = vsel %vm322, %v291, -inf
        %v338 = vrot.slane %v337, 4
        %v339 = vmax.f32 %v337, %v338
        %v340 = vrot.slane %v339, 2
        %v341 = vmax.f32 %v339, %v340
        %v342 = vrot.slane %v341, 1
        %v343 = vmax.f32 %v341, %v342
        %v344 = vsel %vm322, %v307, -inf
        %v345 = vrot.slane %v344, 4
        %v346 = vmax.f32 %v344, %v345
        %v347 = vrot.slane %v346, 2
        %v348 = vmax.f32 %v346, %v347
        %v349 = vrot.slane %v348, 1
        %v350 = vmax.f32 %v348, %v349
        %v351 = vsel %vm322, %v292, -inf
        %v352 = vrot.slane %v351, 4
        %v353 = vmax.f32 %v351, %v352
        %v354 = vrot.slane %v353, 2
        %v355 = vmax.f32 %v353, %v354
        %v356 = vrot.slane %v355, 1
        %v357 = vmax.f32 %v355, %v356
        %v358 = vsel %vm322, %v308, -inf
        %v359 = vrot.slane %v358, 4
        %v360 = vmax.f32 %v358, %v359
        %v361 = vrot.slane %v360, 2
        %v362 = vmax.f32 %v360, %v361
        %v363 = vrot.slane %v362, 1
        %v364 = vmax.f32 %v362, %v363
        %v365 = vsel %vm322, %v293, -inf
        %v366 = vrot.slane %v365, 4
        %v367 = vmax.f32 %v365, %v366
        %v368 = vrot.slane %v367, 2
        %v369 = vmax.f32 %v367, %v368
        %v370 = vrot.slane %v369, 1
        %v371 = vmax.f32 %v369, %v370
        %v372 = vsel %vm322, %v309, -inf
        %v373 = vrot.slane %v372, 4
        %v374 = vmax.f32 %v372, %v373
        %v375 = vrot.slane %v374, 2
        %v376 = vmax.f32 %v374, %v375
        %v377 = vrot.slane %v376, 1
        %v378 = vmax.f32 %v376, %v377
        %v379 = vsel %vm322, %v294, -inf
        %v380 = vrot.slane %v379, 4
        %v381 = vmax.f32 %v379, %v380
        %v382 = vrot.slane %v381, 2
        %v383 = vmax.f32 %v381, %v382
        %v384 = vrot.slane %v383, 1
        %v385 = vmax.f32 %v383, %v384
        %v386 = vsel %vm322, %v310, -inf
        %v387 = vrot.slane %v386, 4
        %v388 = vmax.f32 %v386, %v387
        %v389 = vrot.slane %v388, 2
        %v390 = vmax.f32 %v388, %v389
        %v391 = vrot.slane %v390, 1
        %v392 = vmax.f32 %v390, %v391
        %v393 = vsel %vm322, %v295, -inf
        %v394 = vrot.slane %v393, 4
        %v395 = vmax.f32 %v393, %v394
        %v396 = vrot.slane %v395, 2
        %v397 = vmax.f32 %v395, %v396
        %v398 = vrot.slane %v397, 1
        %v399 = vmax.f32 %v397, %v398
        %v400 = vsel %vm322, %v311, -inf
        %v401 = vrot.slane %v400, 4
        %v402 = vmax.f32 %v400, %v401
        %v403 = vrot.slane %v402, 2
        %v404 = vmax.f32 %v402, %v403
        %v405 = vrot.slane %v404, 1
        %v406 = vmax.f32 %v404, %v405
        %v407 = vsel %vm322, %v296, -inf
        %v408 = vrot.slane %v407, 4
        %v409 = vmax.f32 %v407, %v408
        %v410 = vrot.slane %v409, 2
        %v411 = vmax.f32 %v409, %v410
        %v412 = vrot.slane %v411, 1
        %v413 = vmax.f32 %v411, %v412
        %v414 = vsel %vm322, %v312, -inf
        %v415 = vrot.slane %v414, 4
        %v416 = vmax.f32 %v414, %v415
        %v417 = vrot.slane %v416, 2
        %v418 = vmax.f32 %v416, %v417
        %v419 = vrot.slane %v418, 1
        %v420 = vmax.f32 %v418, %v419
        %v421 = vsel %vm322, %v297, -inf
        %v422 = vrot.slane %v421, 4
        %v423 = vmax.f32 %v421, %v422
        %v424 = vrot.slane %v423, 2
        %v425 = vmax.f32 %v423, %v424
        %v426 = vrot.slane %v425, 1
        %v427 = vmax.f32 %v425, %v426
        %v428 = vsel %vm322, %v313, -inf
        %v429 = vrot.slane %v428, 4
        %v430 = vmax.f32 %v428, %v429
        %v431 = vrot.slane %v430, 2
        %v432 = vmax.f32 %v430, %v431
        %v433 = vrot.slane %v432, 1
        %v434 = vmax.f32 %v432, %v433
        %v435 = vsel %vm322, %v290, 0.0
        %v436 = vrot.slane %v435, 4
        %v437 = vadd.f32 %v435, %v436
        %v438 = vrot.slane %v437, 2
        %v439 = vadd.f32 %v437, %v438
        %v440 = vrot.slane %v439, 1
        %v441 = vadd.f32 %v439, %v440
        %v442 = vsel %vm322, %v306, 0.0
        %v443 = vrot.slane %v442, 4
        %v444 = vadd.f32 %v442, %v443
        %v445 = vrot.slane %v444, 2
        %v446 = vadd.f32 %v444, %v445
        %v447 = vrot.slane %v446, 1
        %v448 = vadd.f32 %v446, %v447
        %v449 = vsel %vm322, %v291, 0.0
        %v450 = vrot.slane %v449, 4
        %v451 = vadd.f32 %v449, %v450
        %v452 = vrot.slane %v451, 2
        %v453 = vadd.f32 %v451, %v452
        %v454 = vrot.slane %v453, 1
        %v455 = vadd.f32 %v453, %v454
        %v456 = vsel %vm322, %v307, 0.0
        %v457 = vrot.slane %v456, 4
        %v458 = vadd.f32 %v456, %v457
        %v459 = vrot.slane %v458, 2
        %v460 = vadd.f32 %v458, %v459
        %v461 = vrot.slane %v460, 1
        %v462 = vadd.f32 %v460, %v461
        %v463 = vsel %vm322, %v292, 0.0
        %v464 = vrot.slane %v463, 4
        %v465 = vadd.f32 %v463, %v464
        %v466 = vrot.slane %v465, 2
        %v467 = vadd.f32 %v465, %v466
        %v468 = vrot.slane %v467, 1
        %v469 = vadd.f32 %v467, %v468
        %v470 = vsel %vm322, %v308, 0.0
        %v471 = vrot.slane %v470, 4
        %v472 = vadd.f32 %v470, %v471
        %v473 = vrot.slane %v472, 2
        %v474 = vadd.f32 %v472, %v473
        %v475 = vrot.slane %v474, 1
        %v476 = vadd.f32 %v474, %v475
        %v477 = vsel %vm322, %v293, 0.0
        %v478 = vrot.slane %v477, 4
        %v479 = vadd.f32 %v477, %v478
        %v480 = vrot.slane %v479, 2
        %v481 = vadd.f32 %v479, %v480
        %v482 = vrot.slane %v481, 1
        %v483 = vadd.f32 %v481, %v482
        %v484 = vsel %vm322, %v309, 0.0
        %v485 = vrot.slane %v484, 4
        %v486 = vadd.f32 %v484, %v485
        %v487 = vrot.slane %v486, 2
        %v488 = vadd.f32 %v486, %v487
        %v489 = vrot.slane %v488, 1
        %v490 = vadd.f32 %v488, %v489
        %v491 = vsel %vm322, %v294, 0.0
        %v492 = vrot.slane %v491, 4
        %v493 = vadd.f32 %v491, %v492
        %v494 = vrot.slane %v493, 2
        %v495 = vadd.f32 %v493, %v494
        %v496 = vrot.slane %v495, 1
        %v497 = vadd.f32 %v495, %v496
        %v498 = vsel %vm322, %v310, 0.0
        %v499 = vrot.slane %v498, 4
        %v500 = vadd.f32 %v498, %v499
        %v501 = vrot.slane %v500, 2
        %v502 = vadd.f32 %v500, %v501
        %v503 = vrot.slane %v502, 1
        %v504 = vadd.f32 %v502, %v503
        %v505 = vsel %vm322, %v295, 0.0
        %v506 = vrot.slane %v505, 4
        %v507 = vadd.f32 %v505, %v506
        %v508 = vrot.slane %v507, 2
        %v509 = vadd.f32 %v507, %v508
        %v510 = vrot.slane %v509, 1
        %v511 = vadd.f32 %v509, %v510
        %v512 = vsel %vm322, %v311, 0.0
        %v513 = vrot.slane %v512, 4
        %v514 = vadd.f32 %v512, %v513
        %v515 = vrot.slane %v514, 2
        %v516 = vadd.f32 %v514, %v515
        %v517 = vrot.slane %v516, 1
        %v518 = vadd.f32 %v516, %v517
        %v519 = vsel %vm322, %v296, 0.0
        %v520 = vrot.slane %v519, 4
        %v521 = vadd.f32 %v519, %v520
        %v522 = vrot.slane %v521, 2
        %v523 = vadd.f32 %v521, %v522
        %v524 = vrot.slane %v523, 1
        %v525 = vadd.f32 %v523, %v524
        %v526 = vsel %vm322, %v312, 0.0
        %v527 = vrot.slane %v526, 4
        %v528 = vadd.f32 %v526, %v527
        %v529 = vrot.slane %v528, 2
        %v530 = vadd.f32 %v528, %v529
        %v531 = vrot.slane %v530, 1
        %v532 = vadd.f32 %v530, %v531
        %v533 = vsel %vm322, %v297, 0.0
        %v534 = vrot.slane %v533, 4
        %v535 = vadd.f32 %v533, %v534
        %v536 = vrot.slane %v535, 2
        %v537 = vadd.f32 %v535, %v536
        %v538 = vrot.slane %v537, 1
        %v539 = vadd.f32 %v537, %v538
        %v540 = vsel %vm322, %v313, 0.0
        %v541 = vrot.slane %v540, 4
        %v542 = vadd.f32 %v540, %v541
        %v543 = vrot.slane %v542, 2
        %v544 = vadd.f32 %v542, %v543
        %v545 = vrot.slane %v544, 1
        %v546 = vadd.f32 %v544, %v545
        %v547 = vld [vmem:[%s1] sm:$0xff]
        %v548 = vld [vmem:[%s2] sm:$0xff]
        %550 = vset.pattern.permute.xlu0 0
        %551 = vperm.xlu0 %550, %v548
        %v552 = vpop.permute.xlu0 %551
        %vm570 = vcmask 1041409
        %v571 = vsel %vm570, %v343, %v329
        %vm572 = vcmask 1042434
        %v573 = vsel %vm572, %v357, %v571
        %vm574 = vcmask 1043459
        %v575 = vsel %vm574, %v371, %v573
        %vm576 = vcmask 1044484
        %v577 = vsel %vm576, %v385, %v575
        %vm578 = vcmask 1045509
        %v579 = vsel %vm578, %v399, %v577
        %vm580 = vcmask 1046534
        %v581 = vsel %vm580, %v413, %v579
        %vm582 = vcmask 1047559
        %v583 = vsel %vm582, %v427, %v581
        %v584 = vsel %vm570, %v350, %v336
        %v585 = vsel %vm572, %v364, %v584
        %v586 = vsel %vm574, %v378, %v585
        %v587 = vsel %vm576, %v392, %v586
        %v588 = vsel %vm578, %v406, %v587
        %v589 = vsel %vm580, %v420, %v588
        %v590 = vsel %vm582, %v434, %v589
        %vm593 = vcmask 64512
        %v595 = vsel %vm593, %v547, 0
        %597 = vmatprep.subr.mxu0 %v590
        %598 = vmatpush1.msra.mxu0 %v583
        %599 = vmatprep.subr.mxu0 0.0
        %600 = vmatpush1.msra.mxu0 0.0
        %601 = vmatprep.subr.mxu0 0.0
        %602 = vmatpush1.msra.mxu0 0.0
        %603 = vmatprep.subr.mxu0 0.0
        %604 = vmatpush1.msra.mxu0 0.0
        %605 = vmatprep.subr.mxu0 0.0
        %606 = vmatpush1.msra.mxu0 0.0
        %607 = vmatprep.subr.mxu0 0.0
        %608 = vmatpush1.msra.mxu0 0.0
        %609 = vmatprep.subr.mxu0 0.0
        %610 = vmatpush1.msra.mxu0 0.0
        %611 = vmatprep.subr.mxu0 0.0
        %612 = vmatpush1.msra.mxu0 0.0
        %613 = vmatprep.subr.mxu0 0.0
        %614 = vmatpush1.msra.mxu0 0.0
        %615 = vmatprep.subr.mxu0 0.0
        %616 = vmatpush1.msra.mxu0 0.0
        %617 = vmatprep.subr.mxu0 0.0
        %618 = vmatpush1.msra.mxu0 0.0
        %619 = vmatprep.subr.mxu0 0.0
        %620 = vmatpush1.msra.mxu0 0.0
        %621 = vmatprep.subr.mxu0 0.0
        %622 = vmatpush1.msra.mxu0 0.0
        %623 = vmatprep.subr.mxu0 0.0
        %624 = vmatpush1.msra.mxu0 0.0
        %625 = vmatprep.subr.mxu0 0.0
        %626 = vmatpush1.msra.mxu0 0.0
        %627 = vmatprep.subr.mxu0 0.0
        %628 = vmatpush1.msra.mxu0 0.0
        %629 = vmatprep.subr.mxu0 0.0
        %630 = vmatpush1.msra.mxu0 0.0
        %631 = vmatprep.subr.mxu0 0.0
        %632 = vmatpush1.msra.mxu0 0.0
        %633 = vmatprep.subr.mxu0 0.0
        %634 = vmatpush1.msra.mxu0 0.0
        %635 = vmatprep.subr.mxu0 0.0
        %636 = vmatpush1.msra.mxu0 0.0
        %637 = vmatprep.subr.mxu0 0.0
        %638 = vmatpush1.msra.mxu0 0.0
        %639 = vmatprep.subr.mxu0 0.0
        %640 = vmatpush1.msra.mxu0 0.0
        %641 = vmatprep.subr.mxu0 0.0
        %642 = vmatpush1.msra.mxu0 0.0
        %643 = vmatprep.subr.mxu0 0.0
        %644 = vmatpush1.msra.mxu0 0.0
        %645 = vmatprep.subr.mxu0 0.0
        %646 = vmatpush1.msra.mxu0 0.0
        %647 = vmatprep.subr.mxu0 0.0
        %648 = vmatpush1.msra.mxu0 0.0
        %649 = vmatprep.subr.mxu0 0.0
        %650 = vmatpush1.msra.mxu0 0.0
        %651 = vmatprep.subr.mxu0 0.0
        %652 = vmatpush1.msra.mxu0 0.0
        %653 = vmatprep.subr.mxu0 0.0
        %654 = vmatpush1.msra.mxu0 0.0
        %655 = vmatprep.subr.mxu0 0.0
        %656 = vmatpush1.msra.mxu0 0.0
        %657 = vmatprep.subr.mxu0 0.0
        %658 = vmatpush1.msra.mxu0 0.0
        %659 = vmatprep.subr.mxu0 0.0
        %660 = vmatpush1.msra.mxu0 0.0
        %661 = vmatprep.mubr.f32.mxu0 0.0
        %662 = vmatmul.mubr.f32.gmra.mrb[0].mxu0 %v595
        %v663 = vpop.f32.mrb[0].mxu0
        %v664 = vadd.f32 %v552, %v663
        %v665 = vpop.f32.mrb[0].mxu0
        %v666 = vadd.f32 %v552, %v665
        %667 = vdwg.mxu0
        %vm668 = vcmp.ge.f32.partialorder %v664, 0.0
        %vm669 = vcmp.ge.f32.partialorder %v666, 0.0
        %v670 = vmul.f32 %v664, 0.01
        %v671 = vmul.f32 %v666, 0.01
        %v672 = vsel %vm668, %v664, %v670
        %v673 = vsel %vm669, %v666, %v671
        %v674 = vld [vmem:[%s3] sm:$0xff]
        %v675 = vld [vmem:[%s4] sm:$0xff]
        %v692 = vsel %vm570, %v455, %v441
        %v693 = vsel %vm572, %v469, %v692
        %v694 = vsel %vm574, %v483, %v693
        %v695 = vsel %vm576, %v497, %v694
        %v696 = vsel %vm578, %v511, %v695
        %v697 = vsel %vm580, %v525, %v696
        %v698 = vsel %vm582, %v539, %v697
        %v699 = vsel %vm570, %v462, %v448
        %v700 = vsel %vm572, %v476, %v699
        %v701 = vsel %vm574, %v490, %v700
        %v702 = vsel %vm576, %v504, %v701
        %v703 = vsel %vm578, %v518, %v702
        %v704 = vsel %vm580, %v532, %v703
        %v705 = vsel %vm582, %v546, %v704
        %v709 = vsel %vm593, %v675, 0
        %711 = vmatprep.subr.mxu0 %v705
        %712 = vmatpush1.msra.mxu0 %v698
        %713 = vmatprep.subr.mxu0 0.0
        %714 = vmatpush1.msra.mxu0 0.0
        %715 = vmatprep.subr.mxu0 0.0
        %716 = vmatpush1.msra.mxu0 0.0
        %717 = vmatprep.subr.mxu0 0.0
        %718 = vmatpush1.msra.mxu0 0.0
        %719 = vmatprep.subr.mxu0 0.0
        %720 = vmatpush1.msra.mxu0 0.0
        %721 = vmatprep.subr.mxu0 0.0
        %722 = vmatpush1.msra.mxu0 0.0
        %723 = vmatprep.subr.mxu0 0.0
        %724 = vmatpush1.msra.mxu0 0.0
        %725 = vmatprep.subr.mxu0 0.0
        %726 = vmatpush1.msra.mxu0 0.0
        %727 = vmatprep.subr.mxu0 0.0
        %728 = vmatpush1.msra.mxu0 0.0
        %729 = vmatprep.subr.mxu0 0.0
        %730 = vmatpush1.msra.mxu0 0.0
        %731 = vmatprep.subr.mxu0 0.0
        %732 = vmatpush1.msra.mxu0 0.0
        %733 = vmatprep.subr.mxu0 0.0
        %734 = vmatpush1.msra.mxu0 0.0
        %735 = vmatprep.subr.mxu0 0.0
        %736 = vmatpush1.msra.mxu0 0.0
        %737 = vmatprep.subr.mxu0 0.0
        %738 = vmatpush1.msra.mxu0 0.0
        %739 = vmatprep.subr.mxu0 0.0
        %740 = vmatpush1.msra.mxu0 0.0
        %741 = vmatprep.subr.mxu0 0.0
        %742 = vmatpush1.msra.mxu0 0.0
        %743 = vmatprep.subr.mxu0 0.0
        %744 = vmatpush1.msra.mxu0 0.0
        %745 = vmatprep.subr.mxu0 0.0
        %746 = vmatpush1.msra.mxu0 0.0
        %747 = vmatprep.subr.mxu0 0.0
        %748 = vmatpush1.msra.mxu0 0.0
        %749 = vmatprep.subr.mxu0 0.0
        %750 = vmatpush1.msra.mxu0 0.0
        %751 = vmatprep.subr.mxu0 0.0
        %752 = vmatpush1.msra.mxu0 0.0
        %753 = vmatprep.subr.mxu0 0.0
        %754 = vmatpush1.msra.mxu0 0.0
        %755 = vmatprep.subr.mxu0 0.0
        %756 = vmatpush1.msra.mxu0 0.0
        %757 = vmatprep.subr.mxu0 0.0
        %758 = vmatpush1.msra.mxu0 0.0
        %759 = vmatprep.subr.mxu0 0.0
        %760 = vmatpush1.msra.mxu0 0.0
        %761 = vmatprep.subr.mxu0 0.0
        %762 = vmatpush1.msra.mxu0 0.0
        %763 = vmatprep.subr.mxu0 0.0
        %764 = vmatpush1.msra.mxu0 0.0
        %765 = vmatprep.subr.mxu0 0.0
        %766 = vmatpush1.msra.mxu0 0.0
        %767 = vmatprep.subr.mxu0 0.0
        %768 = vmatpush1.msra.mxu0 0.0
        %769 = vmatprep.subr.mxu0 0.0
        %770 = vmatpush1.msra.mxu0 0.0
        %771 = vmatprep.subr.mxu0 0.0
        %772 = vmatpush1.msra.mxu0 0.0
        %773 = vmatprep.subr.mxu0 0.0
        %774 = vmatpush1.msra.mxu0 0.0
        %775 = vmatprep.mubr.f32.mxu0 0.0
        %776 = vmatmul.mubr.f32.gmra.mrb[0].mxu0 %v709
        %v777 = vpop.f32.mrb[0].mxu0
        %v778 = vadd.f32 0.0, %v777
        %v779 = vpop.f32.mrb[0].mxu0
        %v780 = vadd.f32 0.0, %v779
        %781 = vdwg.mxu0
        %v783 = vsel %vm593, %v674, 0
        %785 = vmatprep.subr.mxu0 %v673
        %786 = vmatpush1.msra.mxu0 %v672
        %787 = vmatprep.subr.mxu0 0.0
        %788 = vmatpush1.msra.mxu0 0.0
        %789 = vmatprep.subr.mxu0 0.0
        %790 = vmatpush1.msra.mxu0 0.0
        %791 = vmatprep.subr.mxu0 0.0
        %792 = vmatpush1.msra.mxu0 0.0
        %793 = vmatprep.subr.mxu0 0.0
        %794 = vmatpush1.msra.mxu0 0.0
        %795 = vmatprep.subr.mxu0 0.0
        %796 = vmatpush1.msra.mxu0 0.0
        %797 = vmatprep.subr.mxu0 0.0
        %798 = vmatpush1.msra.mxu0 0.0
        %799 = vmatprep.subr.mxu0 0.0
        %800 = vmatpush1.msra.mxu0 0.0
        %801 = vmatprep.subr.mxu0 0.0
        %802 = vmatpush1.msra.mxu0 0.0
        %803 = vmatprep.subr.mxu0 0.0
        %804 = vmatpush1.msra.mxu0 0.0
        %805 = vmatprep.subr.mxu0 0.0
        %806 = vmatpush1.msra.mxu0 0.0
        %807 = vmatprep.subr.mxu0 0.0
        %808 = vmatpush1.msra.mxu0 0.0
        %809 = vmatprep.subr.mxu0 0.0
        %810 = vmatpush1.msra.mxu0 0.0
        %811 = vmatprep.subr.mxu0 0.0
        %812 = vmatpush1.msra.mxu0 0.0
        %813 = vmatprep.subr.mxu0 0.0
        %814 = vmatpush1.msra.mxu0 0.0
        %815 = vmatprep.subr.mxu0 0.0
        %816 = vmatpush1.msra.mxu0 0.0
        %817 = vmatprep.subr.mxu0 0.0
        %818 = vmatpush1.msra.mxu0 0.0
        %819 = vmatprep.subr.mxu0 0.0
        %820 = vmatpush1.msra.mxu0 0.0
        %821 = vmatprep.subr.mxu0 0.0
        %822 = vmatpush1.msra.mxu0 0.0
        %823 = vmatprep.subr.mxu0 0.0
        %824 = vmatpush1.msra.mxu0 0.0
        %825 = vmatprep.subr.mxu0 0.0
        %826 = vmatpush1.msra.mxu0 0.0
        %827 = vmatprep.subr.mxu0 0.0
        %828 = vmatpush1.msra.mxu0 0.0
        %829 = vmatprep.subr.mxu0 0.0
        %830 = vmatpush1.msra.mxu0 0.0
        %831 = vmatprep.subr.mxu0 0.0
        %832 = vmatpush1.msra.mxu0 0.0
        %833 = vmatprep.subr.mxu0 0.0
        %834 = vmatpush1.msra.mxu0 0.0
        %835 = vmatprep.subr.mxu0 0.0
        %836 = vmatpush1.msra.mxu0 0.0
        %837 = vmatprep.subr.mxu0 0.0
        %838 = vmatpush1.msra.mxu0 0.0
        %839 = vmatprep.subr.mxu0 0.0
        %840 = vmatpush1.msra.mxu0 0.0
        %841 = vmatprep.subr.mxu0 0.0
        %842 = vmatpush1.msra.mxu0 0.0
        %843 = vmatprep.subr.mxu0 0.0
        %844 = vmatpush1.msra.mxu0 0.0
        %845 = vmatprep.subr.mxu0 0.0
        %846 = vmatpush1.msra.mxu0 0.0
        %847 = vmatprep.subr.mxu0 0.0
        %848 = vmatpush1.msra.mxu0 0.0
        %849 = vmatprep.mubr.f32.mxu0 0.0
        %850 = vmatmul.mubr.f32.gmra.mrb[0].mxu0 %v783
        %v851 = vpop.f32.mrb[0].mxu0
        %v852 = vadd.f32 %v778, %v851
        %v853 = vpop.f32.mrb[0].mxu0
        %v854 = vadd.f32 %v780, %v853
        %855 = vdwg.mxu0
        %v856 = vld [vmem:[%s5] sm:$0xff]
        %858 = vset.pattern.permute.xlu0 0
        %859 = vperm.xlu0 %858, %v856
        %v860 = vpop.permute.xlu0 %859
        %v862 = vadd.f32 %v852, %v860
        %v863 = vadd.f32 %v854, %v860
        %864 = vst [vmem:[%s287] sm:$0xff] %v862
        %865 = vst [vmem:[%s287 + $0x8] sm:$0xff] %v863
        %s866 = sand.u32 %s178, 1
        %s867 = scalar_lea.sflag [#allocation4], %s866
        %s868 = sand.u32 %s178, 1
        %s869 = smul.addr %s868, 16
        %s870 = scalar_lea.vmem [#allocation5], %s869
        // Predicated region
        $region49: #{tpu_custom_call.1} parent=43 // pred_check
          %p871 = pneg %p188
        $region50: #{tpu_custom_call.1} parent=43 // pred_check_branch
          %873 = sbr.rel (%p871) target = $region52
        $region51: #{tpu_custom_call.1} parent=43 // pred_region
          %s874 = smul.u32 2, %s28
          %s876 = ssub.s32 256, 256
          %877 = vsyncadd %s867, %s876
          %s878 = smul.addr %s27, 2
          %s879 = sadd.s32 %s874, %s878
          %s880 = smul.addr %s879, 128
          %s881 = scalar_lea.hbm %s6, %s880
          %s883 = sshll.u32 %s870, 4
          %s884 = int_to_ptr.vmem [resolvable:$true] %s883
          %886 = dma.vmem_to_hbm [thread:$0]  %s884, 256, %s881, %s867
        $region52: #{tpu_custom_call.1} parent=43 // pred_fallthru
          _
      $region44: #{tpu_custom_call.1} parent=5 // pred_fallthru
        _
      %p887 = scmp.le.s32.totalorder 2, %s18
      // Predicated region
      $region53: #{tpu_custom_call.1} parent=5 // pred_check
        %p888 = pneg %p887
      $region54: #{tpu_custom_call.1} parent=5 // pred_check_branch
        %890 = sbr.rel (%p888) target = $region56
      $region55: #{tpu_custom_call.1} parent=5 // pred_region
        %s891 = ssub.s32 %s18, 2
        // Predicated region
        $region57: #{tpu_custom_call.1} parent=55 // pred_check
          %p892 = pneg %p194
        $region58: #{tpu_custom_call.1} parent=55 // pred_check_branch
          %894 = sbr.rel (%p892) target = $region60
        $region59: #{tpu_custom_call.1} parent=55 // pred_region
          %s895 = sand.u32 %s179, 1
          %s896 = scalar_lea.sflag [#allocation4], %s895
          %s897 = sand.u32 %s179, 1
          %s898 = smul.addr %s897, 16
          %s899 = scalar_lea.vmem [#allocation5], %s898
          %900 = dma.done %s896, 256
        $region60: #{tpu_custom_call.1} parent=55 // pred_fallthru
          _
      $region56: #{tpu_custom_call.1} parent=5 // pred_fallthru
        _
    $region6: #{tpu_custom_call.1} parent=1 // loop_footer
      %s22 = sadd.s32 1, %s18
    $region7: #{tpu_custom_call.1} parent=1 // loop_footer_branch
      %17 = sbr.rel target = $region3
    $region8: #{tpu_custom_call.1} parent=1 // loop_exit
      _
    %901 = vsyncpa [#allocation3], 1
    %s902 = scalar_lea.sflag [#allocation3], 1
    %903 = vsyncpa %s902, 1
    %904 = vsyncpa [#allocation4], 1
    %s905 = scalar_lea.sflag [#allocation4], 1
    %906 = vsyncpa %s905, 1

</llo_original>
